<compile_context>
chip_gen: v7x
topology: tpu7x:2x2x1
jax: 0.10.0
libtpu: 0.0.40
codegen_flags: <defaults>
</compile_context>

<pallas_src>
import functools

import jax
import jax.numpy as jnp
from jax.experimental import pallas as pl
from jax.experimental.pallas import tpu as pltpu

H1, H2 = 400, 300            # logical hidden widths (PyTorch module)
H1_PAD, H2_PAD = 512, 384    # lane-multiple padded widths
A_PAD = 128                  # lane-dense output width


def _round_up(n, m):
    return (n + m - 1) // m * m


@functools.lru_cache(maxsize=None)
def _tpu_config():
    """(multi_tensorcore, bf16_eup) from the local device kind.  Conservative
    defaults if detection fails: single TC, f32 epilogue (always correct)."""
    kind = ""
    try:
        kind = jax.devices()[0].device_kind.lower()
    except Exception:
        pass
    multi_tc = any(t in kind for t in ("v7", "7x", "v4", "v5p"))
    bf16_eup = any(t in kind for t in ("v6", "v7", "7x"))
    return multi_tc, bf16_eup


def _pick_batch_tile(batch, multi_tc, tb_max):
    """As few grid steps as possible (per-step overhead ~0.35us >> per-step
    compute), but keep an even step count >= 2 on 2-TC chips so the
    "parallel" batch axis feeds both TensorCores."""
    steps = max(1, pl.cdiv(batch, tb_max))
    if multi_tc and batch >= 16:
        steps = _round_up(max(steps, 2), 2)
    return _round_up(pl.cdiv(batch, steps), 8)


def actor_kernel(x_ref, w1_ref, b1_ref, w2_ref, b2_ref, w3_ref, b3_ref, o_ref,
                 *, act_dtype):
    # One batch tile per grid step.  bf16 weights are VMEM-resident across the
    # grid; matmuls accumulate in f32 on the MXU; tanh runs in `act_dtype`
    # (bf16 on v6e/v7x, f32 on v5e).
    a1 = jnp.dot(x_ref[...], w1_ref[...],
                 preferred_element_type=jnp.float32) + b1_ref[...]
    h1 = jnp.tanh(a1.astype(act_dtype)).astype(jnp.bfloat16)
    a2 = jnp.dot(h1, w2_ref[...],
                 preferred_element_type=jnp.float32) + b2_ref[...]
    h2 = jnp.maximum(a2, 0.0).astype(jnp.bfloat16)
    a3 = jnp.dot(h2, w3_ref[...],
                 preferred_element_type=jnp.float32) + b3_ref[...]
    o_ref[...] = jnp.tanh(a3.astype(act_dtype)).astype(o_ref.dtype)


def pack_actor_params(params):
    """Pad params to lane multiples and cast weights to bf16 (done once,
    outside the per-step call, halving the per-call weight DMA)."""
    w1, b1, w2, b2, w3, b3 = params
    s_dim = w1.shape[0]

    def pad2(a, rows, cols):
        return jnp.pad(a, ((0, rows - a.shape[0]), (0, cols - a.shape[1])))

    w1p = pad2(w1, s_dim, H1_PAD).astype(jnp.bfloat16)
    b1p = pad2(b1, 1, H1_PAD)                       # biases stay f32
    w2p = pad2(w2, H1_PAD, H2_PAD).astype(jnp.bfloat16)
    b2p = pad2(b2, 1, H2_PAD)
    w3p = pad2(w3, H2_PAD, A_PAD).astype(jnp.bfloat16)
    b3p = pad2(b3, 1, A_PAD)
    return (w1p, b1p, w2p, b2p, w3p, b3p)


def actor_forward(x, packed_params, a_dim, *, tb_max=1024):
    """x: (batch, s_dim) f32. packed_params: output of pack_actor_params.
    Returns (batch, a_dim) f32."""
    w1, b1, w2, b2, w3, b3 = packed_params
    batch, s_dim = x.shape
    multi_tc, bf16_eup = _tpu_config()
    act_dtype = jnp.bfloat16 if bf16_eup else jnp.float32

    TB = _pick_batch_tile(batch, multi_tc, tb_max)
    b_pad = _round_up(batch, TB)

    xp = x.astype(jnp.bfloat16)                     # half-width x DMA
    if b_pad != batch:
        xp = jnp.pad(xp, ((0, b_pad - batch), (0, 0)))

    resident = lambda i: (0, 0)   # weights/biases: same block every step

    weight_bytes = 2 * (s_dim * H1_PAD + H1_PAD * H2_PAD + H2_PAD * A_PAD)
    bias_bytes = 4 * (H1_PAD + H2_PAD + A_PAD)
    cost = pl.CostEstimate(
        flops=2 * b_pad * (s_dim * H1_PAD + H1_PAD * H2_PAD + H2_PAD * A_PAD),
        transcendentals=b_pad * (H1_PAD + A_PAD),
        bytes_accessed=2 * b_pad * (s_dim + A_PAD) + weight_bytes + bias_bytes,
    )

    out = pl.pallas_call(
        functools.partial(actor_kernel, act_dtype=act_dtype),
        out_shape=jax.ShapeDtypeStruct((b_pad, A_PAD), jnp.bfloat16),
        grid_spec=pltpu.PrefetchScalarGridSpec(
            num_scalar_prefetch=0,
            grid=(b_pad // TB,),
            in_specs=[
                pl.BlockSpec((TB, s_dim), lambda i: (i, 0)),      # x tile
                pl.BlockSpec((s_dim, H1_PAD), resident),          # w1
                pl.BlockSpec((1, H1_PAD), resident),              # b1
                pl.BlockSpec((H1_PAD, H2_PAD), resident),         # w2
                pl.BlockSpec((1, H2_PAD), resident),              # b2
                pl.BlockSpec((H2_PAD, A_PAD), resident),          # w3
                pl.BlockSpec((1, A_PAD), resident),               # b3
            ],
            out_specs=pl.BlockSpec((TB, A_PAD), lambda i: (i, 0)),
        ),
        compiler_params=pltpu.CompilerParams(
            # Shards batch-tile steps across TCs on v7x/megacore; harmless on
            # single-TC v5e/v6e.
            dimension_semantics=("parallel",),
        ),
        cost_estimate=cost,
    )(xp, w1, b1, w2, b2, w3, b3)

    return out[:batch, :a_dim].astype(jnp.float32)


def init_actor_params(key, s_dim, a_dim):
    """Deterministic init mirroring the PyTorch module's __init__ as written:
    fanin_init on a (out, in) weight uses fanin = size[0] = out_features;
    forward2's weight is then overwritten with U(-0.003, 0.003). Biases keep
    PyTorch's default U(-1/sqrt(in), 1/sqrt(in)). Weights stored (in, out)."""
    k = jax.random.split(key, 6)

    def u(key, shape, bound):
        return jax.random.uniform(key, shape, jnp.float32, -bound, bound)

    w1 = u(k[0], (s_dim, H1), 1.0 / jnp.sqrt(H1))      # fanin_init, fanin=400
    b1 = u(k[1], (1, H1), 1.0 / jnp.sqrt(s_dim))       # default Linear bias
    w2 = u(k[2], (H1, H2), 0.003)                      # overwritten uniform
    b2 = u(k[3], (1, H2), 1.0 / jnp.sqrt(H1))
    w3 = u(k[4], (H2, a_dim), 1.0 / jnp.sqrt(a_dim))   # fanin_init, fanin=a_dim
    b3 = u(k[5], (1, a_dim), 1.0 / jnp.sqrt(H2))
    return (w1, b1, w2, b2, w3, b3)


def actor_reference(x, params):
    w1, b1, w2, b2, w3, b3 = params
    h1 = jnp.tanh(x @ w1 + b1)
    h2 = jnp.maximum(h1 @ w2 + b2, 0.0)
    return jnp.tanh(h2 @ w3 + b3)


if __name__ == "__main__":
    key = jax.random.PRNGKey(0)
    s_dim, a_dim = 8, 4

    kx1, kx2, kp = jax.random.split(key, 3)
    params = init_actor_params(kp, s_dim, a_dim)
    packed = jax.tree.map(jax.device_put, pack_actor_params(params))

    fwd = jax.jit(lambda x, p: actor_forward(x, p, a_dim))

    # Small (single-step / rollout-sized) batch.
    x_small = jax.random.normal(kx1, (2, s_dim), dtype=jnp.float32)
    out_small = jax.block_until_ready(fwd(x_small, packed))
    ref_small = actor_reference(x_small, params)
    assert out_small.shape == (2, a_dim)
    assert jnp.allclose(out_small, ref_small, atol=2e-2, rtol=2e-2)

    # Training-sized batch exercising the tiled, weight-resident grid path.
    x_big = jax.random.normal(kx2, (512, s_dim), dtype=jnp.float32)
    out_big = jax.block_until_ready(fwd(x_big, packed))
    ref_big = actor_reference(x_big, params)
    assert out_big.shape == (512, a_dim)
    assert jnp.allclose(out_big, ref_big, atol=2e-2, rtol=2e-2)

    print("KERNEL_OK")
</pallas_src>

<mosaic_0001>
module attributes {stable_mosaic.version = 11 : i64} {
  func.func @actor_kernel(%arg0: i32, %arg1: memref<8x8xbf16, #tpu.memory_space<vmem>>, %arg2: memref<8x512xbf16, #tpu.memory_space<vmem>>, %arg3: memref<1x512xf32, #tpu.memory_space<vmem>>, %arg4: memref<512x384xbf16, #tpu.memory_space<vmem>>, %arg5: memref<1x384xf32, #tpu.memory_space<vmem>>, %arg6: memref<384x128xbf16, #tpu.memory_space<vmem>>, %arg7: memref<1x128xf32, #tpu.memory_space<vmem>>, %arg8: memref<8x128xbf16, #tpu.memory_space<vmem>>) attributes {dimension_semantics = [#tpu.dimension_semantics<parallel>], iteration_bounds = array<i64: 1>, scalar_prefetch = 0 : i64, scratch_operands = 0 : i64, tpu.core_type = #tpu.core_type<tc>, window_params = [{transform_indices = @transform_0, window_bounds = array<i64: 8, 8>}, {pipeline_mode = #tpu.pipeline_mode<synchronous>, transform_indices = @transform_1, window_bounds = array<i64: 8, 512>}, {pipeline_mode = #tpu.pipeline_mode<synchronous>, transform_indices = @transform_2, window_bounds = array<i64: 1, 512>}, {pipeline_mode = #tpu.pipeline_mode<synchronous>, transform_indices = @transform_3, window_bounds = array<i64: 512, 384>}, {pipeline_mode = #tpu.pipeline_mode<synchronous>, transform_indices = @transform_4, window_bounds = array<i64: 1, 384>}, {pipeline_mode = #tpu.pipeline_mode<synchronous>, transform_indices = @transform_5, window_bounds = array<i64: 384, 128>}, {pipeline_mode = #tpu.pipeline_mode<synchronous>, transform_indices = @transform_6, window_bounds = array<i64: 1, 128>}, {transform_indices = @transform_7, window_bounds = array<i64: 8, 128>}]} {
    %c0 = arith.constant 0 : index
    %c0_0 = arith.constant 0 : index
    %0 = vector.load %arg1[%c0, %c0_0] : memref<8x8xbf16, #tpu.memory_space<vmem>>, vector<8x8xbf16>
    %c0_1 = arith.constant 0 : index
    %c0_2 = arith.constant 0 : index
    %1 = vector.load %arg2[%c0_1, %c0_2] : memref<8x512xbf16, #tpu.memory_space<vmem>>, vector<8x512xbf16>
    %cst = arith.constant dense<0.000000e+00> : vector<8x512xf32>
    %2 = tpu.matmul %0, %1, %cst {dimension_numbers = #tpu.dot_dimension_numbers<[1], [0], [0], [1], [0, 0, 1, 1], [], []>} : vector<8x8xbf16>, vector<8x512xbf16>, vector<8x512xf32> -> vector<8x512xf32>
    %c0_3 = arith.constant 0 : index
    %c0_4 = arith.constant 0 : index
    %3 = vector.load %arg3[%c0_3, %c0_4] : memref<1x512xf32, #tpu.memory_space<vmem>>, vector<1x512xf32>
    %4 = vector.broadcast %3 : vector<1x512xf32> to vector<8x512xf32>
    %5 = arith.addf %2, %4 : vector<8x512xf32>
    %6 = math.tanh %5 : vector<8x512xf32>
    %7 = arith.truncf %6 : vector<8x512xf32> to vector<8x512xbf16>
    %c0_5 = arith.constant 0 : index
    %c0_6 = arith.constant 0 : index
    %8 = vector.load %arg4[%c0_5, %c0_6] : memref<512x384xbf16, #tpu.memory_space<vmem>>, vector<512x384xbf16>
    %cst_7 = arith.constant dense<0.000000e+00> : vector<8x384xf32>
    %9 = tpu.matmul %7, %8, %cst_7 {dimension_numbers = #tpu.dot_dimension_numbers<[1], [0], [0], [1], [0, 0, 1, 1], [], []>} : vector<8x512xbf16>, vector<512x384xbf16>, vector<8x384xf32> -> vector<8x384xf32>
    %c0_8 = arith.constant 0 : index
    %c0_9 = arith.constant 0 : index
    %10 = vector.load %arg5[%c0_8, %c0_9] : memref<1x384xf32, #tpu.memory_space<vmem>>, vector<1x384xf32>
    %11 = vector.broadcast %10 : vector<1x384xf32> to vector<8x384xf32>
    %12 = arith.addf %9, %11 : vector<8x384xf32>
    %cst_10 = arith.constant 0.000000e+00 : f32
    %13 = vector.broadcast %cst_10 : f32 to vector<8x384xf32>
    %14 = arith.maximumf %12, %13 : vector<8x384xf32>
    %15 = arith.truncf %14 : vector<8x384xf32> to vector<8x384xbf16>
    %c0_11 = arith.constant 0 : index
    %c0_12 = arith.constant 0 : index
    %16 = vector.load %arg6[%c0_11, %c0_12] : memref<384x128xbf16, #tpu.memory_space<vmem>>, vector<384x128xbf16>
    %cst_13 = arith.constant dense<0.000000e+00> : vector<8x128xf32>
    %17 = tpu.matmul %15, %16, %cst_13 {dimension_numbers = #tpu.dot_dimension_numbers<[1], [0], [0], [1], [0, 0, 1, 1], [], []>} : vector<8x384xbf16>, vector<384x128xbf16>, vector<8x128xf32> -> vector<8x128xf32>
    %c0_14 = arith.constant 0 : index
    %c0_15 = arith.constant 0 : index
    %18 = vector.load %arg7[%c0_14, %c0_15] : memref<1x128xf32, #tpu.memory_space<vmem>>, vector<1x128xf32>
    %19 = vector.broadcast %18 : vector<1x128xf32> to vector<8x128xf32>
    %20 = arith.addf %17, %19 : vector<8x128xf32>
    %21 = math.tanh %20 : vector<8x128xf32>
    %22 = arith.truncf %21 : vector<8x128xf32> to vector<8x128xbf16>
    %c0_16 = arith.constant 0 : index
    %c0_17 = arith.constant 0 : index
    %23 = vector.load %arg8[%c0_16, %c0_17] : memref<8x128xbf16, #tpu.memory_space<vmem>>, vector<8x128xbf16>
    tpu.vector_store %arg8[%c0_16, %c0_17], %22 {strides = array<i32>} : memref<8x128xbf16, #tpu.memory_space<vmem>>, vector<8x128xbf16>,
    return
  }
  func.func @transform_0(%arg0: i32) -> (i32, i32) {
    %c0_i32 = arith.constant 0 : i32
    %c0_i32_0 = arith.constant 0 : i32
    return %arg0, %c0_i32 : i32, i32
  }
  func.func @transform_1(%arg0: i32) -> (i32, i32) {
    %c0_i32 = arith.constant 0 : i32
    %c0_i32_0 = arith.constant 0 : i32
    %c0_i32_1 = arith.constant 0 : i32
    return %c0_i32, %c0_i32_0 : i32, i32
  }
  func.func @transform_2(%arg0: i32) -> (i32, i32) {
    %c0_i32 = arith.constant 0 : i32
    %c0_i32_0 = arith.constant 0 : i32
    %c0_i32_1 = arith.constant 0 : i32
    return %c0_i32, %c0_i32_0 : i32, i32
  }
  func.func @transform_3(%arg0: i32) -> (i32, i32) {
    %c0_i32 = arith.constant 0 : i32
    %c0_i32_0 = arith.constant 0 : i32
    %c0_i32_1 = arith.constant 0 : i32
    return %c0_i32, %c0_i32_0 : i32, i32
  }
  func.func @transform_4(%arg0: i32) -> (i32, i32) {
    %c0_i32 = arith.constant 0 : i32
    %c0_i32_0 = arith.constant 0 : i32
    %c0_i32_1 = arith.constant 0 : i32
    return %c0_i32, %c0_i32_0 : i32, i32
  }
  func.func @transform_5(%arg0: i32) -> (i32, i32) {
    %c0_i32 = arith.constant 0 : i32
    %c0_i32_0 = arith.constant 0 : i32
    %c0_i32_1 = arith.constant 0 : i32
    return %c0_i32, %c0_i32_0 : i32, i32
  }
  func.func @transform_6(%arg0: i32) -> (i32, i32) {
    %c0_i32 = arith.constant 0 : i32
    %c0_i32_0 = arith.constant 0 : i32
    %c0_i32_1 = arith.constant 0 : i32
    return %c0_i32, %c0_i32_0 : i32, i32
  }
  func.func @transform_7(%arg0: i32) -> (i32, i32) {
    %c0_i32 = arith.constant 0 : i32
    %c0_i32_0 = arith.constant 0 : i32
    return %arg0, %c0_i32 : i32, i32
  }
}

</mosaic_0001>

<llo_original>
// kernel: _lambda_.1
$region0: #{_lambda_.1}
  #allocation0 [shape = 'u32[]', space=smem, size = 0x4, offset = 0x4, fixed_abs, tag = 'smem constant byte address 0x4 - core index']
  #allocation1 [shape = 'u32[144,128]{1,0:T(1,128)}', space=vmem, size = 0x12000, scoped, tag = 'internal scratch']
  %s0 = inlined_call_operand.vmem [shape: bf16[8,8], index: 0, kind: input, shape index: {}]
  %s1 = inlined_call_operand.hbm [shape: bf16[8,512], index: 1, kind: input, shape index: {}]
  %s2 = inlined_call_operand.vmem [shape: f32[1,512], index: 2, kind: input, shape index: {}]
  %s3 = inlined_call_operand.hbm [shape: bf16[512,384], index: 3, kind: input, shape index: {}]
  %s4 = inlined_call_operand.vmem [shape: f32[1,384], index: 4, kind: input, shape index: {}]
  %s5 = inlined_call_operand.hbm [shape: bf16[384,128], index: 5, kind: input, shape index: {}]
  %s6 = inlined_call_operand.vmem [shape: f32[1,128], index: 6, kind: input, shape index: {}]
  %s7 = inlined_call_operand.vmem [shape: bf16[8,128], index: 7, kind: output, shape index: {}]
  %s8 = sld [smem:[#allocation0]]
  $region50: #{_lambda_.1} parent=0
    _
  %s10 = ssub.s32 1, %s8
  %s11 = scalar_select 0, %s10, %s8
  $region1: #{_lambda_.1} parent=0
    #allocation2 [shape = 'u8[8192]{0}', space=vmem, size = 0x2000, scoped, tag = 'input window, operand 1, single buffered']
    #allocation3 [shape = 's32[1]{0}', space=sflag, size = 0x4, scoped, tag = 'scoped memory for _lambda_.1']
    #allocation4 [shape = 'u8[393216]{0}', space=vmem, size = 0x60000, scoped, tag = 'input window, operand 3, single buffered']
    #allocation5 [shape = 's32[1]{0}', space=sflag, size = 0x4, scoped, tag = 'scoped memory for _lambda_.1']
    #allocation6 [shape = 'u8[98304]{0}', space=vmem, size = 0x18000, scoped, tag = 'input window, operand 5, single buffered']
    %12 = vsyncpa [#allocation3], 0
    %13 = vsyncpa [#allocation5], 0
    // Predicated region
    $region2: #{_lambda_.1} parent=1 // pred_check
      _
    $region3: #{_lambda_.1} parent=1 // pred_check_branch
      %15 = sbr.rel (0) target = $region5
    $region4: #{_lambda_.1} parent=1 // pred_region
      _
    $region5: #{_lambda_.1} parent=1 // pred_fallthru
      _
    // Predicated region
    $region6: #{_lambda_.1} parent=1 // pred_check
      _
    $region7: #{_lambda_.1} parent=1 // pred_check_branch
      %17 = sbr.rel (0) target = $region9
    $region8: #{_lambda_.1} parent=1 // pred_region
      %s19 = ssub.s32 256, 256
      %20 = vsyncadd [#allocation3], %s19
      %s22 = sshll.u32 [#allocation2], 4
      %s23 = int_to_ptr.vmem [resolvable:$true] %s22
      %25 = dma.hbm_to_vmem [thread:$0]  %s1, 256, %s23, [#allocation3]
    $region9: #{_lambda_.1} parent=1 // pred_fallthru
      _
    // Predicated region
    $region10: #{_lambda_.1} parent=1 // pred_check
      _
    $region11: #{_lambda_.1} parent=1 // pred_check_branch
      %27 = sbr.rel (0) target = $region13
    $region12: #{_lambda_.1} parent=1 // pred_region
      _
    $region13: #{_lambda_.1} parent=1 // pred_fallthru
      _
    // Predicated region
    $region14: #{_lambda_.1} parent=1 // pred_check
      _
    $region15: #{_lambda_.1} parent=1 // pred_check_branch
      %29 = sbr.rel (0) target = $region17
    $region16: #{_lambda_.1} parent=1 // pred_region
      %s31 = ssub.s32 12288, 12288
      %32 = vsyncadd [#allocation5], %s31
      %s33 = sshll.u32 [#allocation4], 4
      %s34 = int_to_ptr.vmem [resolvable:$true] %s33
      %39 = dma.hbm_to_vmem [thread:$0]  %s3, 12288, %s34, [#allocation5], 192, 192, 12
    $region17: #{_lambda_.1} parent=1 // pred_fallthru
      _
    // Predicated region
    $region18: #{_lambda_.1} parent=1 // pred_check
      _
    $region19: #{_lambda_.1} parent=1 // pred_check_branch
      %41 = sbr.rel (0) target = $region21
    $region20: #{_lambda_.1} parent=1 // pred_region
      _
    $region21: #{_lambda_.1} parent=1 // pred_fallthru
      _
    // Predicated region
    $region22: #{_lambda_.1} parent=1 // pred_check
      _
    $region23: #{_lambda_.1} parent=1 // pred_check_branch
      %43 = sbr.rel (0) target = $region25
    $region24: #{_lambda_.1} parent=1 // pred_region
      %s45 = ssub.s32 3072, 3072
      %46 = vsyncadd [#allocation5], %s45
      %s47 = sshll.u32 [#allocation6], 4
      %s48 = int_to_ptr.vmem [resolvable:$true] %s47
      %53 = dma.hbm_to_vmem [thread:$0]  %s5, 3072, %s48, [#allocation5], 64, 64, 4
    $region25: #{_lambda_.1} parent=1 // pred_fallthru
      _
    // Predicated region
    $region26: #{_lambda_.1} parent=1 // pred_check
      _
    $region27: #{_lambda_.1} parent=1 // pred_check_branch
      %55 = sbr.rel (0) target = $region29
    $region28: #{_lambda_.1} parent=1 // pred_region
      _
    $region29: #{_lambda_.1} parent=1 // pred_fallthru
      _
    // Predicated region
    $region30: #{_lambda_.1} parent=1 // pred_check
      _
    $region31: #{_lambda_.1} parent=1 // pred_check_branch
      %57 = sbr.rel (0) target = $region33
    $region32: #{_lambda_.1} parent=1 // pred_region
      %58 = dma.done [#allocation3], 256
    $region33: #{_lambda_.1} parent=1 // pred_fallthru
      _
    // Predicated region
    $region34: #{_lambda_.1} parent=1 // pred_check
      _
    $region35: #{_lambda_.1} parent=1 // pred_check_branch
      %60 = sbr.rel (0) target = $region37
    $region36: #{_lambda_.1} parent=1 // pred_region
      %61 = dma.done [#allocation5], 12288
    $region37: #{_lambda_.1} parent=1 // pred_fallthru
      _
    // Predicated region
    $region38: #{_lambda_.1} parent=1 // pred_check
      _
    $region39: #{_lambda_.1} parent=1 // pred_check_branch
      %63 = sbr.rel (0) target = $region41
    $region40: #{_lambda_.1} parent=1 // pred_region
      %64 = dma.done [#allocation5], 3072
    $region41: #{_lambda_.1} parent=1 // pred_fallthru
      _
    %v66 = vld [vmem:[%s0] sm:$0xf]
    %v67 = vld [vmem:[#allocation2] sm:$0xff]
    %v68 = vld [vmem:[#allocation2 + $0x8] sm:$0xff]
    %v69 = vld [vmem:[%s2] sm:$0xf]
    %v71 = vlaneseq
    %v72 = vshrl.u32 %v71, 7
    %v73 = vsub.s32 0, %v72
    %v74 = vrot.slane %v69, %v73
    %v75 = vlaneseq
    %v76 = vshrl.u32 %v75, 7
    %v77 = vsub.s32 1, %v76
    %v78 = vrot.slane %v69, %v77
    %v79 = vlaneseq
    %v80 = vshrl.u32 %v79, 7
    %v81 = vsub.s32 2, %v80
    %v82 = vrot.slane %v69, %v81
    %v83 = vlaneseq
    %v84 = vshrl.u32 %v83, 7
    %v85 = vsub.s32 3, %v84
    %v86 = vrot.slane %v69, %v85
    %v93 = vunpack.c.l.b16 %v67
    %v94 = vunpack.c.h.b16 %v67
    %v95 = vunpack.c.l.b16 %v68
    %v96 = vunpack.c.h.b16 %v68
    %v97 = vpack.c.b16 %v93, %v93
    %v98 = vpack.c.b16 %v94, %v94
    %v99 = vpack.c.b16 %v95, %v95
    %v100 = vpack.c.b16 %v96, %v96
    %vm101 = vcmask 64512
    %v103 = vsel %vm101, %v66, 0
    %vm105 = vcmask 1043456
    %v107 = vsel %vm105, %v97, 0
    %v110 = vsel %vm105, %v98, 0
    %v113 = vsel %vm105, %v99, 0
    %v116 = vsel %vm105, %v100, 0
    %118 = vmatprep.subr.bf16.mxu0 %v110
    %119 = vmatpush1.bf16.msra.mxu0 %v107
    %120 = vmatprep.subr.bf16.mxu0 0
    %121 = vmatpush1.bf16.msra.mxu0 0
    %122 = vmatprep.subr.bf16.mxu0 0
    %123 = vmatpush1.bf16.msra.mxu0 0
    %124 = vmatprep.subr.bf16.mxu0 0
    %125 = vmatpush1.bf16.msra.mxu0 0
    %126 = vmatprep.subr.bf16.mxu0 0
    %127 = vmatpush1.bf16.msra.mxu0 0
    %128 = vmatprep.subr.bf16.mxu0 0
    %129 = vmatpush1.bf16.msra.mxu0 0
    %130 = vmatprep.subr.bf16.mxu0 0
    %131 = vmatpush1.bf16.msra.mxu0 0
    %132 = vmatprep.subr.bf16.mxu0 0
    %133 = vmatpush1.bf16.msra.mxu0 0
    %134 = vmatprep.subr.bf16.mxu0 0
    %135 = vmatpush1.bf16.msra.mxu0 0
    %136 = vmatprep.subr.bf16.mxu0 0
    %137 = vmatpush1.bf16.msra.mxu0 0
    %138 = vmatprep.subr.bf16.mxu0 0
    %139 = vmatpush1.bf16.msra.mxu0 0
    %140 = vmatprep.subr.bf16.mxu0 0
    %141 = vmatpush1.bf16.msra.mxu0 0
    %142 = vmatprep.subr.bf16.mxu0 0
    %143 = vmatpush1.bf16.msra.mxu0 0
    %144 = vmatprep.subr.bf16.mxu0 0
    %145 = vmatpush1.bf16.msra.mxu0 0
    %146 = vmatprep.subr.bf16.mxu0 0
    %147 = vmatpush1.bf16.msra.mxu0 0
    %148 = vmatprep.subr.bf16.mxu0 0
    %149 = vmatpush1.bf16.msra.mxu0 0
    %150 = vmatprep.mubr.bf16.mxu0 0
    %151 = vmatmul.mubr.bf16.gmra.mrb[0].mxu0 %v103
    %v152 = vpop.f32.mrb[0].mxu0
    %v153 = vadd.f32 %v74, %v152
    %v154 = vpop.f32.mrb[0].mxu0
    %v155 = vadd.f32 %v78, %v154
    %v156 = vpop.f32.mrb[0].mxu0
    %v157 = vpop.f32.mrb[0].mxu0
    %158 = vdwg.mxu0
    %159 = vmatprep.subr.bf16.mxu0 %v116
    %160 = vmatpush1.bf16.msra.mxu0 %v113
    %161 = vmatprep.subr.bf16.mxu0 0
    %162 = vmatpush1.bf16.msra.mxu0 0
    %163 = vmatprep.subr.bf16.mxu0 0
    %164 = vmatpush1.bf16.msra.mxu0 0
    %165 = vmatprep.subr.bf16.mxu0 0
    %166 = vmatpush1.bf16.msra.mxu0 0
    %167 = vmatprep.subr.bf16.mxu0 0
    %168 = vmatpush1.bf16.msra.mxu0 0
    %169 = vmatprep.subr.bf16.mxu0 0
    %170 = vmatpush1.bf16.msra.mxu0 0
    %171 = vmatprep.subr.bf16.mxu0 0
    %172 = vmatpush1.bf16.msra.mxu0 0
    %173 = vmatprep.subr.bf16.mxu0 0
    %174 = vmatpush1.bf16.msra.mxu0 0
    %175 = vmatprep.subr.bf16.mxu0 0
    %176 = vmatpush1.bf16.msra.mxu0 0
    %177 = vmatprep.subr.bf16.mxu0 0
    %178 = vmatpush1.bf16.msra.mxu0 0
    %179 = vmatprep.subr.bf16.mxu0 0
    %180 = vmatpush1.bf16.msra.mxu0 0
    %181 = vmatprep.subr.bf16.mxu0 0
    %182 = vmatpush1.bf16.msra.mxu0 0
    %183 = vmatprep.subr.bf16.mxu0 0
    %184 = vmatpush1.bf16.msra.mxu0 0
    %185 = vmatprep.subr.bf16.mxu0 0
    %186 = vmatpush1.bf16.msra.mxu0 0
    %187 = vmatprep.subr.bf16.mxu0 0
    %188 = vmatpush1.bf16.msra.mxu0 0
    %189 = vmatprep.subr.bf16.mxu0 0
    %190 = vmatpush1.bf16.msra.mxu0 0
    %191 = vmatprep.mubr.bf16.mxu0 0
    %192 = vmatmul.mubr.bf16.gmra.mrb[0].mxu0 %v103
    %v193 = vpop.f32.mrb[0].mxu0
    %v194 = vadd.f32 %v82, %v193
    %v195 = vpop.f32.mrb[0].mxu0
    %v196 = vadd.f32 %v86, %v195
    %v197 = vpop.f32.mrb[0].mxu0
    %v198 = vpop.f32.mrb[0].mxu0
    %199 = vdwg.mxu0
    %v200 = vtanh.pop %v153
    %v201 = vtanh.pop %v155
    %v202 = vtanh.pop %v194
    %v203 = vtanh.pop %v196
    %v204 = vpack.c.bf16 %v200, %v200
    %v205 = vpack.c.bf16 %v201, %v201
    %v206 = vpack.c.bf16 %v202, %v202
    %v207 = vpack.c.bf16 %v203, %v203
    %v208 = vld [vmem:[#allocation4] sm:$0xff]
    %v209 = vld [vmem:[#allocation4 + $0x8] sm:$0xf]
    %v210 = vld [vmem:[#allocation4 + $0xc] sm:$0xff]
    %v211 = vld [vmem:[#allocation4 + $0x14] sm:$0xf]
    %v212 = vld [vmem:[#allocation4 + $0x18] sm:$0xff]
    %v213 = vld [vmem:[#allocation4 + $0x20] sm:$0xf]
    %v214 = vld [vmem:[#allocation4 + $0x24] sm:$0xff]
    %v215 = vld [vmem:[#allocation4 + $0x2c] sm:$0xf]
    %v216 = vld [vmem:[#allocation4 + $0x30] sm:$0xff]
    %v217 = vld [vmem:[#allocation4 + $0x38] sm:$0xf]
    %v218 = vld [vmem:[#allocation4 + $0x3c] sm:$0xff]
    %v219 = vld [vmem:[#allocation4 + $0x44] sm:$0xf]
    %v220 = vld [vmem:[#allocation4 + $0x48] sm:$0xff]
    %v221 = vld [vmem:[#allocation4 + $0x50] sm:$0xf]
    %v222 = vld [vmem:[#allocation4 + $0x54] sm:$0xff]
    %v223 = vld [vmem:[#allocation4 + $0x5c] sm:$0xf]
    %v224 = vld [vmem:[#allocation4 + $0x60] sm:$0xff]
    %v225 = vld [vmem:[#allocation4 + $0x68] sm:$0xf]
    %v226 = vld [vmem:[#allocation4 + $0x6c] sm:$0xff]
    %v227 = vld [vmem:[#allocation4 + $0x74] sm:$0xf]
    %v228 = vld [vmem:[#allocation4 + $0x78] sm:$0xff]
    %v229 = vld [vmem:[#allocation4 + $0x80] sm:$0xf]
    %v230 = vld [vmem:[#allocation4 + $0x84] sm:$0xff]
    %v231 = vld [vmem:[#allocation4 + $0x8c] sm:$0xf]
    %v232 = vld [vmem:[#allocation4 + $0x90] sm:$0xff]
    %v233 = vld [vmem:[#allocation4 + $0x98] sm:$0xf]
    %v234 = vld [vmem:[#allocation4 + $0x9c] sm:$0xff]
    %v235 = vld [vmem:[#allocation4 + $0xa4] sm:$0xf]
    %v236 = vld [vmem:[#allocation4 + $0xa8] sm:$0xff]
    %v237 = vld [vmem:[#allocation4 + $0xb0] sm:$0xf]
    %v238 = vld [vmem:[#allocation4 + $0xb4] sm:$0xff]
    %v239 = vld [vmem:[#allocation4 + $0xbc] sm:$0xf]
    %v240 = vld [vmem:[#allocation4 + $0xc0] sm:$0xff]
    %v241 = vld [vmem:[#allocation4 + $0xc8] sm:$0xf]
    %v242 = vld [vmem:[#allocation4 + $0xcc] sm:$0xff]
    %v243 = vld [vmem:[#allocation4 + $0xd4] sm:$0xf]
    %v244 = vld [vmem:[#allocation4 + $0xd8] sm:$0xff]
    %v245 = vld [vmem:[#allocation4 + $0xe0] sm:$0xf]
    %v246 = vld [vmem:[#allocation4 + $0xe4] sm:$0xff]
    %v247 = vld [vmem:[#allocation4 + $0xec] sm:$0xf]
    %v248 = vld [vmem:[#allocation4 + $0xf0] sm:$0xff]
    %v249 = vld [vmem:[#allocation4 + $0xf8] sm:$0xf]
    %v250 = vld [vmem:[#allocation4 + $0xfc] sm:$0xff]
    %v251 = vld [vmem:[#allocation4 + $0x104] sm:$0xf]
    %v252 = vld [vmem:[#allocation4 + $0x108] sm:$0xff]
    %v253 = vld [vmem:[#allocation4 + $0x110] sm:$0xf]
    %v254 = vld [vmem:[#allocation4 + $0x114] sm:$0xff]
    %v255 = vld [vmem:[#allocation4 + $0x11c] sm:$0xf]
    %v256 = vld [vmem:[#allocation4 + $0x120] sm:$0xff]
    %v257 = vld [vmem:[#allocation4 + $0x128] sm:$0xf]
    %v258 = vld [vmem:[#allocation4 + $0x12c] sm:$0xff]
    %v259 = vld [vmem:[#allocation4 + $0x134] sm:$0xf]
    %v260 = vld [vmem:[#allocation4 + $0x138] sm:$0xff]
    %v261 = vld [vmem:[#allocation4 + $0x140] sm:$0xf]
    %v262 = vld [vmem:[#allocation4 + $0x144] sm:$0xff]
    %v263 = vld [vmem:[#allocation4 + $0x14c] sm:$0xf]
    %v264 = vld [vmem:[#allocation4 + $0x150] sm:$0xff]
    %v265 = vld [vmem:[#allocation4 + $0x158] sm:$0xf]
    %v266 = vld [vmem:[#allocation4 + $0x15c] sm:$0xff]
    %v267 = vld [vmem:[#allocation4 + $0x164] sm:$0xf]
    %v268 = vld [vmem:[#allocation4 + $0x168] sm:$0xff]
    %v269 = vld [vmem:[#allocation4 + $0x170] sm:$0xf]
    %v270 = vld [vmem:[#allocation4 + $0x174] sm:$0xff]
    %v271 = vld [vmem:[#allocation4 + $0x17c] sm:$0xf]
    %v272 = vld [vmem:[#allocation4 + $0x180] sm:$0xff]
    %v273 = vld [vmem:[#allocation4 + $0x188] sm:$0xf]
    %v274 = vld [vmem:[#allocation4 + $0x18c] sm:$0xff]
    %v275 = vld [vmem:[#allocation4 + $0x194] sm:$0xf]
    %v276 = vld [vmem:[#allocation4 + $0x198] sm:$0xff]
    %v277 = vld [vmem:[#allocation4 + $0x1a0] sm:$0xf]
    %v278 = vld [vmem:[#allocation4 + $0x1a4] sm:$0xff]
    %v279 = vld [vmem:[#allocation4 + $0x1ac] sm:$0xf]
    %v280 = vld [vmem:[#allocation4 + $0x1b0] sm:$0xff]
    %v281 = vld [vmem:[#allocation4 + $0x1b8] sm:$0xf]
    %v282 = vld [vmem:[#allocation4 + $0x1bc] sm:$0xff]
    %v283 = vld [vmem:[#allocation4 + $0x1c4] sm:$0xf]
    %v284 = vld [vmem:[#allocation4 + $0x1c8] sm:$0xff]
    %v285 = vld [vmem:[#allocation4 + $0x1d0] sm:$0xf]
    %v286 = vld [vmem:[#allocation4 + $0x1d4] sm:$0xff]
    %v287 = vld [vmem:[#allocation4 + $0x1dc] sm:$0xf]
    %v288 = vld [vmem:[#allocation4 + $0x1e0] sm:$0xff]
    %v289 = vld [vmem:[#allocation4 + $0x1e8] sm:$0xf]
    %v290 = vld [vmem:[#allocation4 + $0x1ec] sm:$0xff]
    %v291 = vld [vmem:[#allocation4 + $0x1f4] sm:$0xf]
    %v292 = vld [vmem:[#allocation4 + $0x1f8] sm:$0xff]
    %v293 = vld [vmem:[#allocation4 + $0x200] sm:$0xf]
    %v294 = vld [vmem:[#allocation4 + $0x204] sm:$0xff]
    %v295 = vld [vmem:[#allocation4 + $0x20c] sm:$0xf]
    %v296 = vld [vmem:[#allocation4 + $0x210] sm:$0xff]
    %v297 = vld [vmem:[#allocation4 + $0x218] sm:$0xf]
    %v298 = vld [vmem:[#allocation4 + $0x21c] sm:$0xff]
    %v299 = vld [vmem:[#allocation4 + $0x224] sm:$0xf]
    %v300 = vld [vmem:[#allocation4 + $0x228] sm:$0xff]
    %v301 = vld [vmem:[#allocation4 + $0x230] sm:$0xf]
    %v302 = vld [vmem:[#allocation4 + $0x234] sm:$0xff]
    %v303 = vld [vmem:[#allocation4 + $0x23c] sm:$0xf]
    %v304 = vld [vmem:[#allocation4 + $0x240] sm:$0xff]
    %v305 = vld [vmem:[#allocation4 + $0x248] sm:$0xf]
    %v306 = vld [vmem:[#allocation4 + $0x24c] sm:$0xff]
    %v307 = vld [vmem:[#allocation4 + $0x254] sm:$0xf]
    %v308 = vld [vmem:[#allocation4 + $0x258] sm:$0xff]
    %v309 = vld [vmem:[#allocation4 + $0x260] sm:$0xf]
    %v310 = vld [vmem:[#allocation4 + $0x264] sm:$0xff]
    %v311 = vld [vmem:[#allocation4 + $0x26c] sm:$0xf]
    %v312 = vld [vmem:[#allocation4 + $0x270] sm:$0xff]
    %v313 = vld [vmem:[#allocation4 + $0x278] sm:$0xf]
    %v314 = vld [vmem:[#allocation4 + $0x27c] sm:$0xff]
    %v315 = vld [vmem:[#allocation4 + $0x284] sm:$0xf]
    %v316 = vld [vmem:[#allocation4 + $0x288] sm:$0xff]
    %v317 = vld [vmem:[#allocation4 + $0x290] sm:$0xf]
    %v318 = vld [vmem:[#allocation4 + $0x294] sm:$0xff]
    %v319 = vld [vmem:[#allocation4 + $0x29c] sm:$0xf]
    %v320 = vld [vmem:[#allocation4 + $0x2a0] sm:$0xff]
    %v321 = vld [vmem:[#allocation4 + $0x2a8] sm:$0xf]
    %v322 = vld [vmem:[#allocation4 + $0x2ac] sm:$0xff]
    %v323 = vld [vmem:[#allocation4 + $0x2b4] sm:$0xf]
    %v324 = vld [vmem:[#allocation4 + $0x2b8] sm:$0xff]
    %v325 = vld [vmem:[#allocation4 + $0x2c0] sm:$0xf]
    %v326 = vld [vmem:[#allocation4 + $0x2c4] sm:$0xff]
    %v327 = vld [vmem:[#allocation4 + $0x2cc] sm:$0xf]
    %v328 = vld [vmem:[#allocation4 + $0x2d0] sm:$0xff]
    %v329 = vld [vmem:[#allocation4 + $0x2d8] sm:$0xf]
    %v330 = vld [vmem:[#allocation4 + $0x2dc] sm:$0xff]
    %v331 = vld [vmem:[#allocation4 + $0x2e4] sm:$0xf]
    %v332 = vld [vmem:[#allocation4 + $0x2e8] sm:$0xff]
    %v333 = vld [vmem:[#allocation4 + $0x2f0] sm:$0xf]
    %v334 = vld [vmem:[#allocation4 + $0x2f4] sm:$0xff]
    %v335 = vld [vmem:[#allocation4 + $0x2fc] sm:$0xf]
    %v336 = vld [vmem:[%s4] sm:$0x7]
    %v338 = vlaneseq
    %v339 = vshrl.u32 %v338, 7
    %v340 = vsub.s32 0, %v339
    %v341 = vrot.slane %v336, %v340
    %v342 = vlaneseq
    %v343 = vshrl.u32 %v342, 7
    %v344 = vsub.s32 1, %v343
    %v345 = vrot.slane %v336, %v344
    %v346 = vlaneseq
    %v347 = vshrl.u32 %v346, 7
    %v348 = vsub.s32 2, %v347
    %v349 = vrot.slane %v336, %v348
    %v481 = vunpack.c.l.b16 %v208
    %v482 = vunpack.c.h.b16 %v208
    %v483 = vunpack.c.l.b16 %v209
    %v484 = vunpack.c.l.b16 %v210
    %v485 = vunpack.c.h.b16 %v210
    %v486 = vunpack.c.l.b16 %v211
    %v487 = vunpack.c.l.b16 %v212
    %v488 = vunpack.c.h.b16 %v212
    %v489 = vunpack.c.l.b16 %v213
    %v490 = vunpack.c.l.b16 %v214
    %v491 = vunpack.c.h.b16 %v214
    %v492 = vunpack.c.l.b16 %v215
    %v493 = vunpack.c.l.b16 %v216
    %v494 = vunpack.c.h.b16 %v216
    %v495 = vunpack.c.l.b16 %v217
    %v496 = vunpack.c.l.b16 %v218
    %v497 = vunpack.c.h.b16 %v218
    %v498 = vunpack.c.l.b16 %v219
    %v499 = vunpack.c.l.b16 %v220
    %v500 = vunpack.c.h.b16 %v220
    %v501 = vunpack.c.l.b16 %v221
    %v502 = vunpack.c.l.b16 %v222
    %v503 = vunpack.c.h.b16 %v222
    %v504 = vunpack.c.l.b16 %v223
    %v505 = vunpack.c.l.b16 %v224
    %v506 = vunpack.c.h.b16 %v224
    %v507 = vunpack.c.l.b16 %v225
    %v508 = vunpack.c.l.b16 %v226
    %v509 = vunpack.c.h.b16 %v226
    %v510 = vunpack.c.l.b16 %v227
    %v511 = vunpack.c.l.b16 %v228
    %v512 = vunpack.c.h.b16 %v228
    %v513 = vunpack.c.l.b16 %v229
    %v514 = vunpack.c.l.b16 %v230
    %v515 = vunpack.c.h.b16 %v230
    %v516 = vunpack.c.l.b16 %v231
    %v517 = vunpack.c.l.b16 %v232
    %v518 = vunpack.c.h.b16 %v232
    %v519 = vunpack.c.l.b16 %v233
    %v520 = vunpack.c.l.b16 %v234
    %v521 = vunpack.c.h.b16 %v234
    %v522 = vunpack.c.l.b16 %v235
    %v523 = vunpack.c.l.b16 %v236
    %v524 = vunpack.c.h.b16 %v236
    %v525 = vunpack.c.l.b16 %v237
    %v526 = vunpack.c.l.b16 %v238
    %v527 = vunpack.c.h.b16 %v238
    %v528 = vunpack.c.l.b16 %v239
    %v529 = vunpack.c.l.b16 %v240
    %v530 = vunpack.c.h.b16 %v240
    %v531 = vunpack.c.l.b16 %v241
    %v532 = vunpack.c.l.b16 %v242
    %v533 = vunpack.c.h.b16 %v242
    %v534 = vunpack.c.l.b16 %v243
    %v535 = vunpack.c.l.b16 %v244
    %v536 = vunpack.c.h.b16 %v244
    %v537 = vunpack.c.l.b16 %v245
    %v538 = vunpack.c.l.b16 %v246
    %v539 = vunpack.c.h.b16 %v246
    %v540 = vunpack.c.l.b16 %v247
    %v541 = vunpack.c.l.b16 %v248
    %v542 = vunpack.c.h.b16 %v248
    %v543 = vunpack.c.l.b16 %v249
    %v544 = vunpack.c.l.b16 %v250
    %v545 = vunpack.c.h.b16 %v250
    %v546 = vunpack.c.l.b16 %v251
    %v547 = vunpack.c.l.b16 %v252
    %v548 = vunpack.c.h.b16 %v252
    %v549 = vunpack.c.l.b16 %v253
    %v550 = vunpack.c.l.b16 %v254
    %v551 = vunpack.c.h.b16 %v254
    %v552 = vunpack.c.l.b16 %v255
    %v553 = vunpack.c.l.b16 %v256
    %v554 = vunpack.c.h.b16 %v256
    %v555 = vunpack.c.l.b16 %v257
    %v556 = vunpack.c.l.b16 %v258
    %v557 = vunpack.c.h.b16 %v258
    %v558 = vunpack.c.l.b16 %v259
    %v559 = vunpack.c.l.b16 %v260
    %v560 = vunpack.c.h.b16 %v260
    %v561 = vunpack.c.l.b16 %v261
    %v562 = vunpack.c.l.b16 %v262
    %v563 = vunpack.c.h.b16 %v262
    %v564 = vunpack.c.l.b16 %v263
    %v565 = vunpack.c.l.b16 %v264
    %v566 = vunpack.c.h.b16 %v264
    %v567 = vunpack.c.l.b16 %v265
    %v568 = vunpack.c.l.b16 %v266
    %v569 = vunpack.c.h.b16 %v266
    %v570 = vunpack.c.l.b16 %v267
    %v571 = vunpack.c.l.b16 %v268
    %v572 = vunpack.c.h.b16 %v268
    %v573 = vunpack.c.l.b16 %v269
    %v574 = vunpack.c.l.b16 %v270
    %v575 = vunpack.c.h.b16 %v270
    %v576 = vunpack.c.l.b16 %v271
    %v577 = vunpack.c.l.b16 %v272
    %v578 = vunpack.c.h.b16 %v272
    %v579 = vunpack.c.l.b16 %v273
    %v580 = vunpack.c.l.b16 %v274
    %v581 = vunpack.c.h.b16 %v274
    %v582 = vunpack.c.l.b16 %v275
    %v583 = vunpack.c.l.b16 %v276
    %v584 = vunpack.c.h.b16 %v276
    %v585 = vunpack.c.l.b16 %v277
    %v586 = vunpack.c.l.b16 %v278
    %v587 = vunpack.c.h.b16 %v278
    %v588 = vunpack.c.l.b16 %v279
    %v589 = vunpack.c.l.b16 %v280
    %v590 = vunpack.c.h.b16 %v280
    %v591 = vunpack.c.l.b16 %v281
    %v592 = vunpack.c.l.b16 %v282
    %v593 = vunpack.c.h.b16 %v282
    %v594 = vunpack.c.l.b16 %v283
    %v595 = vunpack.c.l.b16 %v284
    %v596 = vunpack.c.h.b16 %v284
    %v597 = vunpack.c.l.b16 %v285
    %v598 = vunpack.c.l.b16 %v286
    %v599 = vunpack.c.h.b16 %v286
    %v600 = vunpack.c.l.b16 %v287
    %v601 = vunpack.c.l.b16 %v288
    %v602 = vunpack.c.h.b16 %v288
    %v603 = vunpack.c.l.b16 %v289
    %v604 = vunpack.c.l.b16 %v290
    %v605 = vunpack.c.h.b16 %v290
    %v606 = vunpack.c.l.b16 %v291
    %v607 = vunpack.c.l.b16 %v292
    %v608 = vunpack.c.h.b16 %v292
    %v609 = vunpack.c.l.b16 %v293
    %v610 = vunpack.c.l.b16 %v294
    %v611 = vunpack.c.h.b16 %v294
    %v612 = vunpack.c.l.b16 %v295
    %v613 = vunpack.c.l.b16 %v296
    %v614 = vunpack.c.h.b16 %v296
    %v615 = vunpack.c.l.b16 %v297
    %v616 = vunpack.c.l.b16 %v298
    %v617 = vunpack.c.h.b16 %v298
    %v618 = vunpack.c.l.b16 %v299
    %v619 = vunpack.c.l.b16 %v300
    %v620 = vunpack.c.h.b16 %v300
    %v621 = vunpack.c.l.b16 %v301
    %v622 = vunpack.c.l.b16 %v302
    %v623 = vunpack.c.h.b16 %v302
    %v624 = vunpack.c.l.b16 %v303
    %v625 = vunpack.c.l.b16 %v304
    %v626 = vunpack.c.h.b16 %v304
    %v627 = vunpack.c.l.b16 %v305
    %v628 = vunpack.c.l.b16 %v306
    %v629 = vunpack.c.h.b16 %v306
    %v630 = vunpack.c.l.b16 %v307
    %v631 = vunpack.c.l.b16 %v308
    %v632 = vunpack.c.h.b16 %v308
    %v633 = vunpack.c.l.b16 %v309
    %v634 = vunpack.c.l.b16 %v310
    %v635 = vunpack.c.h.b16 %v310
    %v636 = vunpack.c.l.b16 %v311
    %v637 = vunpack.c.l.b16 %v312
    %v638 = vunpack.c.h.b16 %v312
    %v639 = vunpack.c.l.b16 %v313
    %v640 = vunpack.c.l.b16 %v314
    %v641 = vunpack.c.h.b16 %v314
    %v642 = vunpack.c.l.b16 %v315
    %v643 = vunpack.c.l.b16 %v316
    %v644 = vunpack.c.h.b16 %v316
    %v645 = vunpack.c.l.b16 %v317
    %v646 = vunpack.c.l.b16 %v318
    %v647 = vunpack.c.h.b16 %v318
    %v648 = vunpack.c.l.b16 %v319
    %v649 = vunpack.c.l.b16 %v320
    %v650 = vunpack.c.h.b16 %v320
    %v651 = vunpack.c.l.b16 %v321
    %v652 = vunpack.c.l.b16 %v322
    %v653 = vunpack.c.h.b16 %v322
    %v654 = vunpack.c.l.b16 %v323
    %v655 = vunpack.c.l.b16 %v324
    %v656 = vunpack.c.h.b16 %v324
    %v657 = vunpack.c.l.b16 %v325
    %v658 = vunpack.c.l.b16 %v326
    %v659 = vunpack.c.h.b16 %v326
    %v660 = vunpack.c.l.b16 %v327
    %v661 = vunpack.c.l.b16 %v328
    %v662 = vunpack.c.h.b16 %v328
    %v663 = vunpack.c.l.b16 %v329
    %v664 = vunpack.c.l.b16 %v330
    %v665 = vunpack.c.h.b16 %v330
    %v666 = vunpack.c.l.b16 %v331
    %v667 = vunpack.c.l.b16 %v332
    %v668 = vunpack.c.h.b16 %v332
    %v669 = vunpack.c.l.b16 %v333
    %v670 = vunpack.c.l.b16 %v334
    %v671 = vunpack.c.h.b16 %v334
    %v672 = vunpack.c.l.b16 %v335
    %v673 = vpack.c.b16 %v484, %v481
    %v674 = vpack.c.b16 %v485, %v482
    %v675 = vpack.c.b16 %v486, %v483
    %v676 = vpack.c.b16 %v490, %v487
    %v677 = vpack.c.b16 %v491, %v488
    %v678 = vpack.c.b16 %v492, %v489
    %v679 = vpack.c.b16 %v496, %v493
    %v680 = vpack.c.b16 %v497, %v494
    %v681 = vpack.c.b16 %v498, %v495
    %v682 = vpack.c.b16 %v502, %v499
    %v683 = vpack.c.b16 %v503, %v500
    %v684 = vpack.c.b16 %v504, %v501
    %v685 = vpack.c.b16 %v508, %v505
    %v686 = vpack.c.b16 %v509, %v506
    %v687 = vpack.c.b16 %v510, %v507
    %v688 = vpack.c.b16 %v514, %v511
    %v689 = vpack.c.b16 %v515, %v512
    %v690 = vpack.c.b16 %v516, %v513
    %v691 = vpack.c.b16 %v520, %v517
    %v692 = vpack.c.b16 %v521, %v518
    %v693 = vpack.c.b16 %v522, %v519
    %v694 = vpack.c.b16 %v526, %v523
    %v695 = vpack.c.b16 %v527, %v524
    %v696 = vpack.c.b16 %v528, %v525
    %v697 = vpack.c.b16 %v532, %v529
    %v698 = vpack.c.b16 %v533, %v530
    %v699 = vpack.c.b16 %v534, %v531
    %v700 = vpack.c.b16 %v538, %v535
    %v701 = vpack.c.b16 %v539, %v536
    %v702 = vpack.c.b16 %v540, %v537
    %v703 = vpack.c.b16 %v544, %v541
    %v704 = vpack.c.b16 %v545, %v542
    %v705 = vpack.c.b16 %v546, %v543
    %v706 = vpack.c.b16 %v550, %v547
    %v707 = vpack.c.b16 %v551, %v548
    %v708 = vpack.c.b16 %v552, %v549
    %v709 = vpack.c.b16 %v556, %v553
    %v710 = vpack.c.b16 %v557, %v554
    %v711 = vpack.c.b16 %v558, %v555
    %v712 = vpack.c.b16 %v562, %v559
    %v713 = vpack.c.b16 %v563, %v560
    %v714 = vpack.c.b16 %v564, %v561
    %v715 = vpack.c.b16 %v568, %v565
    %v716 = vpack.c.b16 %v569, %v566
    %v717 = vpack.c.b16 %v570, %v567
    %v718 = vpack.c.b16 %v574, %v571
    %v719 = vpack.c.b16 %v575, %v572
    %v720 = vpack.c.b16 %v576, %v573
    %v721 = vpack.c.b16 %v580, %v577
    %v722 = vpack.c.b16 %v581, %v578
    %v723 = vpack.c.b16 %v582, %v579
    %v724 = vpack.c.b16 %v586, %v583
    %v725 = vpack.c.b16 %v587, %v584
    %v726 = vpack.c.b16 %v588, %v585
    %v727 = vpack.c.b16 %v592, %v589
    %v728 = vpack.c.b16 %v593, %v590
    %v729 = vpack.c.b16 %v594, %v591
    %v730 = vpack.c.b16 %v598, %v595
    %v731 = vpack.c.b16 %v599, %v596
    %v732 = vpack.c.b16 %v600, %v597
    %v733 = vpack.c.b16 %v604, %v601
    %v734 = vpack.c.b16 %v605, %v602
    %v735 = vpack.c.b16 %v606, %v603
    %v736 = vpack.c.b16 %v610, %v607
    %v737 = vpack.c.b16 %v611, %v608
    %v738 = vpack.c.b16 %v612, %v609
    %v739 = vpack.c.b16 %v616, %v613
    %v740 = vpack.c.b16 %v617, %v614
    %v741 = vpack.c.b16 %v618, %v615
    %v742 = vpack.c.b16 %v622, %v619
    %v743 = vpack.c.b16 %v623, %v620
    %v744 = vpack.c.b16 %v624, %v621
    %v745 = vpack.c.b16 %v628, %v625
    %v746 = vpack.c.b16 %v629, %v626
    %v747 = vpack.c.b16 %v630, %v627
    %v748 = vpack.c.b16 %v634, %v631
    %v749 = vpack.c.b16 %v635, %v632
    %v750 = vpack.c.b16 %v636, %v633
    %v751 = vpack.c.b16 %v640, %v637
    %v752 = vpack.c.b16 %v641, %v638
    %v753 = vpack.c.b16 %v642, %v639
    %v754 = vpack.c.b16 %v646, %v643
    %v755 = vpack.c.b16 %v647, %v644
    %v756 = vpack.c.b16 %v648, %v645
    %v757 = vpack.c.b16 %v652, %v649
    %v758 = vpack.c.b16 %v653, %v650
    %v759 = vpack.c.b16 %v654, %v651
    %v760 = vpack.c.b16 %v658, %v655
    %v761 = vpack.c.b16 %v659, %v656
    %v762 = vpack.c.b16 %v660, %v657
    %v763 = vpack.c.b16 %v664, %v661
    %v764 = vpack.c.b16 %v665, %v662
    %v765 = vpack.c.b16 %v666, %v663
    %v766 = vpack.c.b16 %v670, %v667
    %v767 = vpack.c.b16 %v671, %v668
    %v768 = vpack.c.b16 %v672, %v669
    %865 = vmatprep.subr.bf16.mxu0 %v674
    %866 = vmatpush1.bf16.msra.mxu0 %v673
    %867 = vmatprep.subr.bf16.mxu0 %v677
    %868 = vmatpush1.bf16.msra.mxu0 %v676
    %869 = vmatprep.subr.bf16.mxu0 %v680
    %870 = vmatpush1.bf16.msra.mxu0 %v679
    %871 = vmatprep.subr.bf16.mxu0 %v683
    %872 = vmatpush1.bf16.msra.mxu0 %v682
    %873 = vmatprep.subr.bf16.mxu0 %v686
    %874 = vmatpush1.bf16.msra.mxu0 %v685
    %875 = vmatprep.subr.bf16.mxu0 %v689
    %876 = vmatpush1.bf16.msra.mxu0 %v688
    %877 = vmatprep.subr.bf16.mxu0 %v692
    %878 = vmatpush1.bf16.msra.mxu0 %v691
    %879 = vmatprep.subr.bf16.mxu0 %v695
    %880 = vmatpush1.bf16.msra.mxu0 %v694
    %881 = vmatprep.subr.bf16.mxu0 %v698
    %882 = vmatpush1.bf16.msra.mxu0 %v697
    %883 = vmatprep.subr.bf16.mxu0 %v701
    %884 = vmatpush1.bf16.msra.mxu0 %v700
    %885 = vmatprep.subr.bf16.mxu0 %v704
    %886 = vmatpush1.bf16.msra.mxu0 %v703
    %887 = vmatprep.subr.bf16.mxu0 %v707
    %888 = vmatpush1.bf16.msra.mxu0 %v706
    %889 = vmatprep.subr.bf16.mxu0 %v710
    %890 = vmatpush1.bf16.msra.mxu0 %v709
    %891 = vmatprep.subr.bf16.mxu0 %v713
    %892 = vmatpush1.bf16.msra.mxu0 %v712
    %893 = vmatprep.subr.bf16.mxu0 %v716
    %894 = vmatpush1.bf16.msra.mxu0 %v715
    %895 = vmatprep.subr.bf16.mxu0 %v719
    %896 = vmatpush1.bf16.msra.mxu0 %v718
    %897 = vmatprep.mubr.bf16.mxu0 %v205
    %898 = vmatmul.mubr.bf16.gmra.mrb[0].mxu0 %v204
    %v899 = vpop.f32.mrb[0].mxu0
    %v900 = vadd.f32 %v341, %v899
    %v901 = vpop.f32.mrb[0].mxu0
    %v902 = vadd.f32 %v345, %v901
    %v903 = vpop.f32.mrb[0].mxu0
    %v904 = vpop.f32.mrb[0].mxu0
    %905 = vdwg.mxu0
    %906 = vmatprep.subr.bf16.mxu0 %v722
    %907 = vmatpush1.bf16.msra.mxu0 %v721
    %908 = vmatprep.subr.bf16.mxu0 %v725
    %909 = vmatpush1.bf16.msra.mxu0 %v724
    %910 = vmatprep.subr.bf16.mxu0 %v728
    %911 = vmatpush1.bf16.msra.mxu0 %v727
    %912 = vmatprep.subr.bf16.mxu0 %v731
    %913 = vmatpush1.bf16.msra.mxu0 %v730
    %914 = vmatprep.subr.bf16.mxu0 %v734
    %915 = vmatpush1.bf16.msra.mxu0 %v733
    %916 = vmatprep.subr.bf16.mxu0 %v737
    %917 = vmatpush1.bf16.msra.mxu0 %v736
    %918 = vmatprep.subr.bf16.mxu0 %v740
    %919 = vmatpush1.bf16.msra.mxu0 %v739
    %920 = vmatprep.subr.bf16.mxu0 %v743
    %921 = vmatpush1.bf16.msra.mxu0 %v742
    %922 = vmatprep.subr.bf16.mxu0 %v746
    %923 = vmatpush1.bf16.msra.mxu0 %v745
    %924 = vmatprep.subr.bf16.mxu0 %v749
    %925 = vmatpush1.bf16.msra.mxu0 %v748
    %926 = vmatprep.subr.bf16.mxu0 %v752
    %927 = vmatpush1.bf16.msra.mxu0 %v751
    %928 = vmatprep.subr.bf16.mxu0 %v755
    %929 = vmatpush1.bf16.msra.mxu0 %v754
    %930 = vmatprep.subr.bf16.mxu0 %v758
    %931 = vmatpush1.bf16.msra.mxu0 %v757
    %932 = vmatprep.subr.bf16.mxu0 %v761
    %933 = vmatpush1.bf16.msra.mxu0 %v760
    %934 = vmatprep.subr.bf16.mxu0 %v764
    %935 = vmatpush1.bf16.msra.mxu0 %v763
    %936 = vmatprep.subr.bf16.mxu0 %v767
    %937 = vmatpush1.bf16.msra.mxu0 %v766
    %938 = vmatprep.mubr.bf16.mxu0 %v207
    %939 = vmatmul.mubr.bf16.gmra.mrb[0].mxu0 %v206
    %v940 = vpop.f32.mrb[0].mxu0
    %v941 = vadd.f32 %v900, %v940
    %v942 = vpop.f32.mrb[0].mxu0
    %v943 = vadd.f32 %v902, %v942
    %v944 = vpop.f32.mrb[0].mxu0
    %v945 = vpop.f32.mrb[0].mxu0
    %946 = vdwg.mxu0
    %947 = vmatprep.subr.bf16.mxu0 0
    %948 = vmatpush1.bf16.msra.mxu0 %v675
    %949 = vmatprep.subr.bf16.mxu0 0
    %950 = vmatpush1.bf16.msra.mxu0 %v678
    %951 = vmatprep.subr.bf16.mxu0 0
    %952 = vmatpush1.bf16.msra.mxu0 %v681
    %953 = vmatprep.subr.bf16.mxu0 0
    %954 = vmatpush1.bf16.msra.mxu0 %v684
    %955 = vmatprep.subr.bf16.mxu0 0
    %956 = vmatpush1.bf16.msra.mxu0 %v687
    %957 = vmatprep.subr.bf16.mxu0 0
    %958 = vmatpush1.bf16.msra.mxu0 %v690
    %959 = vmatprep.subr.bf16.mxu0 0
    %960 = vmatpush1.bf16.msra.mxu0 %v693
    %961 = vmatprep.subr.bf16.mxu0 0
    %962 = vmatpush1.bf16.msra.mxu0 %v696
    %963 = vmatprep.subr.bf16.mxu0 0
    %964 = vmatpush1.bf16.msra.mxu0 %v699
    %965 = vmatprep.subr.bf16.mxu0 0
    %966 = vmatpush1.bf16.msra.mxu0 %v702
    %967 = vmatprep.subr.bf16.mxu0 0
    %968 = vmatpush1.bf16.msra.mxu0 %v705
    %969 = vmatprep.subr.bf16.mxu0 0
    %970 = vmatpush1.bf16.msra.mxu0 %v708
    %971 = vmatprep.subr.bf16.mxu0 0
    %972 = vmatpush1.bf16.msra.mxu0 %v711
    %973 = vmatprep.subr.bf16.mxu0 0
    %974 = vmatpush1.bf16.msra.mxu0 %v714
    %975 = vmatprep.subr.bf16.mxu0 0
    %976 = vmatpush1.bf16.msra.mxu0 %v717
    %977 = vmatprep.subr.bf16.mxu0 0
    %978 = vmatpush1.bf16.msra.mxu0 %v720
    %979 = vmatprep.mubr.bf16.mxu0 %v205
    %980 = vmatmul.mubr.bf16.gmra.mrb[0].mxu0 %v204
    %v981 = vpop.f32.mrb[0].mxu0
    %v982 = vadd.f32 %v349, %v981
    %v983 = vpop.f32.mrb[0].mxu0
    %v984 = vpop.f32.mrb[0].mxu0
    %v985 = vpop.f32.mrb[0].mxu0
    %986 = vdwg.mxu0
    %987 = vmatprep.subr.bf16.mxu0 0
    %988 = vmatpush1.bf16.msra.mxu0 %v723
    %989 = vmatprep.subr.bf16.mxu0 0
    %990 = vmatpush1.bf16.msra.mxu0 %v726
    %991 = vmatprep.subr.bf16.mxu0 0
    %992 = vmatpush1.bf16.msra.mxu0 %v729
    %993 = vmatprep.subr.bf16.mxu0 0
    %994 = vmatpush1.bf16.msra.mxu0 %v732
    %995 = vmatprep.subr.bf16.mxu0 0
    %996 = vmatpush1.bf16.msra.mxu0 %v735
    %997 = vmatprep.subr.bf16.mxu0 0
    %998 = vmatpush1.bf16.msra.mxu0 %v738
    %999 = vmatprep.subr.bf16.mxu0 0
    %1000 = vmatpush1.bf16.msra.mxu0 %v741
    %1001 = vmatprep.subr.bf16.mxu0 0
    %1002 = vmatpush1.bf16.msra.mxu0 %v744
    %1003 = vmatprep.subr.bf16.mxu0 0
    %1004 = vmatpush1.bf16.msra.mxu0 %v747
    %1005 = vmatprep.subr.bf16.mxu0 0
    %1006 = vmatpush1.bf16.msra.mxu0 %v750
    %1007 = vmatprep.subr.bf16.mxu0 0
    %1008 = vmatpush1.bf16.msra.mxu0 %v753
    %1009 = vmatprep.subr.bf16.mxu0 0
    %1010 = vmatpush1.bf16.msra.mxu0 %v756
    %1011 = vmatprep.subr.bf16.mxu0 0
    %1012 = vmatpush1.bf16.msra.mxu0 %v759
    %1013 = vmatprep.subr.bf16.mxu0 0
    %1014 = vmatpush1.bf16.msra.mxu0 %v762
    %1015 = vmatprep.subr.bf16.mxu0 0
    %1016 = vmatpush1.bf16.msra.mxu0 %v765
    %1017 = vmatprep.subr.bf16.mxu0 0
    %1018 = vmatpush1.bf16.msra.mxu0 %v768
    %1019 = vmatprep.mubr.bf16.mxu0 %v207
    %1020 = vmatmul.mubr.bf16.gmra.mrb[0].mxu0 %v206
    %v1021 = vpop.f32.mrb[0].mxu0
    %v1022 = vadd.f32 %v982, %v1021
    %v1023 = vpop.f32.mrb[0].mxu0
    %v1024 = vpop.f32.mrb[0].mxu0
    %v1025 = vpop.f32.mrb[0].mxu0
    %1026 = vdwg.mxu0
    %v1027 = vmax.f32 %v941, 0.0
    %v1028 = vmax.f32 %v943, 0.0
    %v1029 = vmax.f32 %v1022, 0.0
    %v1030 = vpack.c.bf16 %v1027, %v1027
    %v1031 = vpack.c.bf16 %v1028, %v1028
    %v1032 = vpack.c.bf16 %v1029, %v1029
    %v1033 = vld [vmem:[#allocation6] sm:$0xf]
    %v1034 = vld [vmem:[#allocation6 + $0x4] sm:$0xf]
    %v1035 = vld [vmem:[#allocation6 + $0x8] sm:$0xf]
    %v1036 = vld [vmem:[#allocation6 + $0xc] sm:$0xf]
    %v1037 = vld [vmem:[#allocation6 + $0x10] sm:$0xf]
    %v1038 = vld [vmem:[#allocation6 + $0x14] sm:$0xf]
    %v1039 = vld [vmem:[#allocation6 + $0x18] sm:$0xf]
    %v1040 = vld [vmem:[#allocation6 + $0x1c] sm:$0xf]
    %v1041 = vld [vmem:[#allocation6 + $0x20] sm:$0xf]
    %v1042 = vld [vmem:[#allocation6 + $0x24] sm:$0xf]
    %v1043 = vld [vmem:[#allocation6 + $0x28] sm:$0xf]
    %v1044 = vld [vmem:[#allocation6 + $0x2c] sm:$0xf]
    %v1045 = vld [vmem:[#allocation6 + $0x30] sm:$0xf]
    %v1046 = vld [vmem:[#allocation6 + $0x34] sm:$0xf]
    %v1047 = vld [vmem:[#allocation6 + $0x38] sm:$0xf]
    %v1048 = vld [vmem:[#allocation6 + $0x3c] sm:$0xf]
    %v1049 = vld [vmem:[#allocation6 + $0x40] sm:$0xf]
    %v1050 = vld [vmem:[#allocation6 + $0x44] sm:$0xf]
    %v1051 = vld [vmem:[#allocation6 + $0x48] sm:$0xf]
    %v1052 = vld [vmem:[#allocation6 + $0x4c] sm:$0xf]
    %v1053 = vld [vmem:[#allocation6 + $0x50] sm:$0xf]
    %v1054 = vld [vmem:[#allocation6 + $0x54] sm:$0xf]
    %v1055 = vld [vmem:[#allocation6 + $0x58] sm:$0xf]
    %v1056 = vld [vmem:[#allocation6 + $0x5c] sm:$0xf]
    %v1057 = vld [vmem:[#allocation6 + $0x60] sm:$0xf]
    %v1058 = vld [vmem:[#allocation6 + $0x64] sm:$0xf]
    %v1059 = vld [vmem:[#allocation6 + $0x68] sm:$0xf]
    %v1060 = vld [vmem:[#allocation6 + $0x6c] sm:$0xf]
    %v1061 = vld [vmem:[#allocation6 + $0x70] sm:$0xf]
    %v1062 = vld [vmem:[#allocation6 + $0x74] sm:$0xf]
    %v1063 = vld [vmem:[#allocation6 + $0x78] sm:$0xf]
    %v1064 = vld [vmem:[#allocation6 + $0x7c] sm:$0xf]
    %v1065 = vld [vmem:[#allocation6 + $0x80] sm:$0xf]
    %v1066 = vld [vmem:[#allocation6 + $0x84] sm:$0xf]
    %v1067 = vld [vmem:[#allocation6 + $0x88] sm:$0xf]
    %v1068 = vld [vmem:[#allocation6 + $0x8c] sm:$0xf]
    %v1069 = vld [vmem:[#allocation6 + $0x90] sm:$0xf]
    %v1070 = vld [vmem:[#allocation6 + $0x94] sm:$0xf]
    %v1071 = vld [vmem:[#allocation6 + $0x98] sm:$0xf]
    %v1072 = vld [vmem:[#allocation6 + $0x9c] sm:$0xf]
    %v1073 = vld [vmem:[#allocation6 + $0xa0] sm:$0xf]
    %v1074 = vld [vmem:[#allocation6 + $0xa4] sm:$0xf]
    %v1075 = vld [vmem:[#allocation6 + $0xa8] sm:$0xf]
    %v1076 = vld [vmem:[#allocation6 + $0xac] sm:$0xf]
    %v1077 = vld [vmem:[#allocation6 + $0xb0] sm:$0xf]
    %v1078 = vld [vmem:[#allocation6 + $0xb4] sm:$0xf]
    %v1079 = vld [vmem:[#allocation6 + $0xb8] sm:$0xf]
    %v1080 = vld [vmem:[#allocation6 + $0xbc] sm:$0xf]
    %v1081 = vld [vmem:[%s6] sm:$0x1]
    %v1083 = vlaneseq
    %v1084 = vshrl.u32 %v1083, 7
    %v1085 = vsub.s32 0, %v1084
    %v1086 = vrot.slane %v1081, %v1085
    %v1136 = vunpack.c.l.b16 %v1033
    %v1137 = vunpack.c.l.b16 %v1034
    %v1138 = vunpack.c.l.b16 %v1035
    %v1139 = vunpack.c.l.b16 %v1036
    %v1140 = vunpack.c.l.b16 %v1037
    %v1141 = vunpack.c.l.b16 %v1038
    %v1142 = vunpack.c.l.b16 %v1039
    %v1143 = vunpack.c.l.b16 %v1040
    %v1144 = vunpack.c.l.b16 %v1041
    %v1145 = vunpack.c.l.b16 %v1042
    %v1146 = vunpack.c.l.b16 %v1043
    %v1147 = vunpack.c.l.b16 %v1044
    %v1148 = vunpack.c.l.b16 %v1045
    %v1149 = vunpack.c.l.b16 %v1046
    %v1150 = vunpack.c.l.b16 %v1047
    %v1151 = vunpack.c.l.b16 %v1048
    %v1152 = vunpack.c.l.b16 %v1049
    %v1153 = vunpack.c.l.b16 %v1050
    %v1154 = vunpack.c.l.b16 %v1051
    %v1155 = vunpack.c.l.b16 %v1052
    %v1156 = vunpack.c.l.b16 %v1053
    %v1157 = vunpack.c.l.b16 %v1054
    %v1158 = vunpack.c.l.b16 %v1055
    %v1159 = vunpack.c.l.b16 %v1056
    %v1160 = vunpack.c.l.b16 %v1057
    %v1161 = vunpack.c.l.b16 %v1058
    %v1162 = vunpack.c.l.b16 %v1059
    %v1163 = vunpack.c.l.b16 %v1060
    %v1164 = vunpack.c.l.b16 %v1061
    %v1165 = vunpack.c.l.b16 %v1062
    %v1166 = vunpack.c.l.b16 %v1063
    %v1167 = vunpack.c.l.b16 %v1064
    %v1168 = vunpack.c.l.b16 %v1065
    %v1169 = vunpack.c.l.b16 %v1066
    %v1170 = vunpack.c.l.b16 %v1067
    %v1171 = vunpack.c.l.b16 %v1068
    %v1172 = vunpack.c.l.b16 %v1069
    %v1173 = vunpack.c.l.b16 %v1070
    %v1174 = vunpack.c.l.b16 %v1071
    %v1175 = vunpack.c.l.b16 %v1072
    %v1176 = vunpack.c.l.b16 %v1073
    %v1177 = vunpack.c.l.b16 %v1074
    %v1178 = vunpack.c.l.b16 %v1075
    %v1179 = vunpack.c.l.b16 %v1076
    %v1180 = vunpack.c.l.b16 %v1077
    %v1181 = vunpack.c.l.b16 %v1078
    %v1182 = vunpack.c.l.b16 %v1079
    %v1183 = vunpack.c.l.b16 %v1080
    %v1184 = vpack.c.b16 %v1137, %v1136
    %v1185 = vpack.c.b16 %v1139, %v1138
    %v1186 = vpack.c.b16 %v1141, %v1140
    %v1187 = vpack.c.b16 %v1143, %v1142
    %v1188 = vpack.c.b16 %v1145, %v1144
    %v1189 = vpack.c.b16 %v1147, %v1146
    %v1190 = vpack.c.b16 %v1149, %v1148
    %v1191 = vpack.c.b16 %v1151, %v1150
    %v1192 = vpack.c.b16 %v1153, %v1152
    %v1193 = vpack.c.b16 %v1155, %v1154
    %v1194 = vpack.c.b16 %v1157, %v1156
    %v1195 = vpack.c.b16 %v1159, %v1158
    %v1196 = vpack.c.b16 %v1161, %v1160
    %v1197 = vpack.c.b16 %v1163, %v1162
    %v1198 = vpack.c.b16 %v1165, %v1164
    %v1199 = vpack.c.b16 %v1167, %v1166
    %v1200 = vpack.c.b16 %v1169, %v1168
    %v1201 = vpack.c.b16 %v1171, %v1170
    %v1202 = vpack.c.b16 %v1173, %v1172
    %v1203 = vpack.c.b16 %v1175, %v1174
    %v1204 = vpack.c.b16 %v1177, %v1176
    %v1205 = vpack.c.b16 %v1179, %v1178
    %v1206 = vpack.c.b16 %v1181, %v1180
    %v1207 = vpack.c.b16 %v1183, %v1182
    %1232 = vmatprep.subr.bf16.mxu0 0
    %1233 = vmatpush1.bf16.msra.mxu0 %v1184
    %1234 = vmatprep.subr.bf16.mxu0 0
    %1235 = vmatpush1.bf16.msra.mxu0 %v1185
    %1236 = vmatprep.subr.bf16.mxu0 0
    %1237 = vmatpush1.bf16.msra.mxu0 %v1186
    %1238 = vmatprep.subr.bf16.mxu0 0
    %1239 = vmatpush1.bf16.msra.mxu0 %v1187
    %1240 = vmatprep.subr.bf16.mxu0 0
    %1241 = vmatpush1.bf16.msra.mxu0 %v1188
    %1242 = vmatprep.subr.bf16.mxu0 0
    %1243 = vmatpush1.bf16.msra.mxu0 %v1189
    %1244 = vmatprep.subr.bf16.mxu0 0
    %1245 = vmatpush1.bf16.msra.mxu0 %v1190
    %1246 = vmatprep.subr.bf16.mxu0 0
    %1247 = vmatpush1.bf16.msra.mxu0 %v1191
    %1248 = vmatprep.subr.bf16.mxu0 0
    %1249 = vmatpush1.bf16.msra.mxu0 %v1192
    %1250 = vmatprep.subr.bf16.mxu0 0
    %1251 = vmatpush1.bf16.msra.mxu0 %v1193
    %1252 = vmatprep.subr.bf16.mxu0 0
    %1253 = vmatpush1.bf16.msra.mxu0 %v1194
    %1254 = vmatprep.subr.bf16.mxu0 0
    %1255 = vmatpush1.bf16.msra.mxu0 %v1195
    %1256 = vmatprep.subr.bf16.mxu0 0
    %1257 = vmatpush1.bf16.msra.mxu0 %v1196
    %1258 = vmatprep.subr.bf16.mxu0 0
    %1259 = vmatpush1.bf16.msra.mxu0 %v1197
    %1260 = vmatprep.subr.bf16.mxu0 0
    %1261 = vmatpush1.bf16.msra.mxu0 %v1198
    %1262 = vmatprep.subr.bf16.mxu0 0
    %1263 = vmatpush1.bf16.msra.mxu0 %v1199
    %1264 = vmatprep.mubr.bf16.mxu0 %v1031
    %1265 = vmatmul.mubr.bf16.gmra.mrb[0].mxu0 %v1030
    %v1266 = vpop.f32.mrb[0].mxu0
    %v1267 = vadd.f32 %v1086, %v1266
    %v1268 = vpop.f32.mrb[0].mxu0
    %v1269 = vpop.f32.mrb[0].mxu0
    %v1270 = vpop.f32.mrb[0].mxu0
    %1271 = vdwg.mxu0
    %1272 = vmatprep.subr.bf16.mxu0 0
    %1273 = vmatpush1.bf16.msra.mxu0 %v1200
    %1274 = vmatprep.subr.bf16.mxu0 0
    %1275 = vmatpush1.bf16.msra.mxu0 %v1201
    %1276 = vmatprep.subr.bf16.mxu0 0
    %1277 = vmatpush1.bf16.msra.mxu0 %v1202
    %1278 = vmatprep.subr.bf16.mxu0 0
    %1279 = vmatpush1.bf16.msra.mxu0 %v1203
    %1280 = vmatprep.subr.bf16.mxu0 0
    %1281 = vmatpush1.bf16.msra.mxu0 %v1204
    %1282 = vmatprep.subr.bf16.mxu0 0
    %1283 = vmatpush1.bf16.msra.mxu0 %v1205
    %1284 = vmatprep.subr.bf16.mxu0 0
    %1285 = vmatpush1.bf16.msra.mxu0 %v1206
    %1286 = vmatprep.subr.bf16.mxu0 0
    %1287 = vmatpush1.bf16.msra.mxu0 %v1207
    %1288 = vmatprep.subr.bf16.mxu0 0
    %1289 = vmatpush1.bf16.msra.mxu0 0
    %1290 = vmatprep.subr.bf16.mxu0 0
    %1291 = vmatpush1.bf16.msra.mxu0 0
    %1292 = vmatprep.subr.bf16.mxu0 0
    %1293 = vmatpush1.bf16.msra.mxu0 0
    %1294 = vmatprep.subr.bf16.mxu0 0
    %1295 = vmatpush1.bf16.msra.mxu0 0
    %1296 = vmatprep.subr.bf16.mxu0 0
    %1297 = vmatpush1.bf16.msra.mxu0 0
    %1298 = vmatprep.subr.bf16.mxu0 0
    %1299 = vmatpush1.bf16.msra.mxu0 0
    %1300 = vmatprep.subr.bf16.mxu0 0
    %1301 = vmatpush1.bf16.msra.mxu0 0
    %1302 = vmatprep.subr.bf16.mxu0 0
    %1303 = vmatpush1.bf16.msra.mxu0 0
    %1304 = vmatprep.mubr.bf16.mxu0 0
    %1305 = vmatmul.mubr.bf16.gmra.mrb[0].mxu0 %v1032
    %v1306 = vpop.f32.mrb[0].mxu0
    %v1307 = vadd.f32 %v1267, %v1306
    %v1308 = vpop.f32.mrb[0].mxu0
    %v1309 = vpop.f32.mrb[0].mxu0
    %v1310 = vpop.f32.mrb[0].mxu0
    %1311 = vdwg.mxu0
    %v1312 = vtanh.pop %v1307
    %v1313 = vpack.c.bf16 %v1312, %v1312
    %1314 = vst [vmem:[%s7] sm:$0xf] %v1313
    // Predicated region
    $region42: #{_lambda_.1} parent=1 // pred_check
      _
    $region43: #{_lambda_.1} parent=1 // pred_check_branch
      %1316 = sbr.rel (0) target = $region45
    $region44: #{_lambda_.1} parent=1 // pred_region
      _
    $region45: #{_lambda_.1} parent=1 // pred_fallthru
      _
    // Predicated region
    $region46: #{_lambda_.1} parent=1 // pred_check
      _
    $region47: #{_lambda_.1} parent=1 // pred_check_branch
      %1318 = sbr.rel (0) target = $region49
    $region48: #{_lambda_.1} parent=1 // pred_region
      _
    $region49: #{_lambda_.1} parent=1 // pred_fallthru
      _
    %1319 = vsyncpa [#allocation3], 1
    %1320 = vsyncpa [#allocation5], 1

</llo_original>
